<compile_context>
chip_gen: v5e
topology: v5e:2x2
jax: 0.10.0
libtpu: 0.0.40
codegen_flags: <defaults>
</compile_context>

<pallas_src>
import functools

import jax
import jax.numpy as jnp
from jax.experimental import pallas as pl
from jax.experimental.pallas import tpu as pltpu


# ---------------------------------------------------------------------------
# Pallas kernels
# ---------------------------------------------------------------------------
def _conv_bn_prelu_kernel(p_ref, w_ref, b_ref, a_ref, o_ref):
    # p_ref: (K, tm) bf16 patches, w_ref: (Cout, K) bf16 folded weights,
    # b_ref: (Cout, 1) f32 folded bias, a_ref: (1, 1) f32 PReLU alpha,
    # o_ref: (Cout, tm) f32 -- lane-dense output tile.
    acc = jnp.dot(w_ref[...], p_ref[...], preferred_element_type=jnp.float32)
    y = acc + b_ref[...]
    o_ref[...] = jnp.where(y > 0.0, y, a_ref[...] * y).astype(o_ref.dtype)


def _conv_bn_add_kernel(p_ref, w_ref, b_ref, r_ref, o_ref):
    # Same as above but with a fused residual add (r_ref: (Cout, tm) f32).
    acc = jnp.dot(w_ref[...], p_ref[...], preferred_element_type=jnp.float32)
    o_ref[...] = (acc + b_ref[...] + r_ref[...]).astype(o_ref.dtype)


# ---------------------------------------------------------------------------
# Wrapper glue
# ---------------------------------------------------------------------------
def _fold_bn(conv_w, conv_b, gamma, beta, mean, var, eps=1e-5):
    """Fold eval-mode BatchNorm2d into the conv weights/bias."""
    scale = gamma * jax.lax.rsqrt(var + eps)                    # (Cout,)
    return conv_w * scale[:, None, None, None], (conv_b - mean) * scale + beta


def _im2col_cnhw(x_cm, ksize, stride, padding):
    """x_cm: (C, N, H, W) -> patches (C*ksize*ksize, N*OH*OW).

    K-axis ordering is (c, kh, kw), matching weight.reshape(Cout, C*k*k).
    Only major dims move; lane-carrying spatial dims stay in the last slots.
    """
    c, n, h, w = x_cm.shape
    oh = (h + 2 * padding - ksize) // stride + 1
    ow = (w + 2 * padding - ksize) // stride + 1
    xp = jnp.pad(x_cm, ((0, 0), (0, 0), (padding, padding), (padding, padding)))
    cols = []
    for i in range(ksize):
        for j in range(ksize):
            cols.append(xp[:, :, i:i + stride * oh:stride, j:j + stride * ow:stride])
    p = jnp.stack(cols, axis=1)                     # (C, k*k, N, OH, OW)
    return p.reshape(c * ksize * ksize, n * oh * ow), oh, ow


def _pick_tile_m(m):
    # Biggest lane tile that still leaves >=2 grid steps (v7x has 2 TCs);
    # per-tile VMEM (bf16 patches + f32 out, double buffered) stays tiny.
    for tm in (1024, 512, 256, 128):
        if m >= 2 * tm:
            return tm
    return 128


def _conv_block_pallas(x_cm, w_f, b_f, *, ksize, stride, padding,
                       prelu_alpha=None, residual_cm=None):
    """One fused Conv+BN(+PReLU | +residual) pass.  x_cm is (C, N, H, W)."""
    c_in, n, h, w = x_cm.shape
    cout = w_f.shape[0]

    patches, oh, ow = _im2col_cnhw(x_cm, ksize, stride, padding)   # (K, M) f32
    k_dim, m = patches.shape

    tm = _pick_tile_m(m)
    m_pad = pl.cdiv(m, tm) * tm
    pad_m = m_pad - m

    patches = jnp.pad(patches, ((0, 0), (0, pad_m))).astype(jnp.bfloat16)
    w_mat = w_f.reshape(cout, c_in * ksize * ksize).astype(jnp.bfloat16)
    b_col = b_f.reshape(cout, 1).astype(jnp.float32)
    grid = (m_pad // tm,)

    in_specs = [
        pl.BlockSpec((k_dim, tm), lambda i: (0, i)),     # patch tile (lane = M)
        pl.BlockSpec((cout, k_dim), lambda i: (0, 0)),   # folded weights, resident
        pl.BlockSpec((cout, 1), lambda i: (0, 0)),       # folded bias
    ]
    bytes_accessed = (k_dim * m_pad * 2 + cout * k_dim * 2 + cout * 4
                      + cout * m_pad * 4)

    if prelu_alpha is not None:
        kernel = _conv_bn_prelu_kernel
        extra = jnp.reshape(prelu_alpha, (1, 1)).astype(jnp.float32)
        in_specs.append(pl.BlockSpec((1, 1), lambda i: (0, 0)))
        bytes_accessed += 4
    else:
        kernel = _conv_bn_add_kernel
        extra = jnp.pad(residual_cm, ((0, 0), (0, pad_m))).astype(jnp.float32)
        in_specs.append(pl.BlockSpec((cout, tm), lambda i: (0, i)))
        bytes_accessed += cout * m_pad * 4

    out_cm = pl.pallas_call(
        kernel,
        out_shape=jax.ShapeDtypeStruct((cout, m_pad), jnp.float32),
        grid_spec=pltpu.PrefetchScalarGridSpec(
            num_scalar_prefetch=0,
            grid=grid,
            in_specs=in_specs,
            out_specs=pl.BlockSpec((cout, tm), lambda i: (0, i)),
        ),
        compiler_params=pltpu.CompilerParams(
            dimension_semantics=("parallel",),
            vmem_limit_bytes=32 * 1024 * 1024),
        cost_estimate=pl.CostEstimate(
            flops=2 * m_pad * k_dim * cout,
            transcendentals=0,
            bytes_accessed=bytes_accessed),
    )(patches, w_mat, b_col, extra)

    return out_cm[:, :m].reshape(cout, n, oh, ow)      # stay in (C, N, H, W)


@functools.partial(jax.jit, static_argnames=("kernel_size", "stride", "padding"))
def residual_block(x, params, *, kernel_size=3, stride=1, padding=1):
    """fx = ConvBnPReLU(x); fx = ConvBn(fx); return fx + x.  NCHW in/out."""
    n, c, h, w = x.shape
    w1, b1 = _fold_bn(params["w1"], params["b1"], params["g1"], params["be1"],
                      params["m1"], params["v1"])
    w2, b2 = _fold_bn(params["w2"], params["b2"], params["g2"], params["be2"],
                      params["m2"], params["v2"])

    x_cm = x.transpose(1, 0, 2, 3)                     # (C, N, H, W), major-dim swap
    fx_cm = _conv_block_pallas(x_cm, w1, b1, ksize=kernel_size, stride=stride,
                               padding=padding, prelu_alpha=params["alpha"])
    out_cm = _conv_block_pallas(fx_cm, w2, b2, ksize=kernel_size, stride=stride,
                                padding=padding,
                                residual_cm=x_cm.reshape(c, n * h * w))
    return out_cm.transpose(1, 0, 2, 3)                # back to NCHW


# ---------------------------------------------------------------------------
# Reference (plain JAX, f32) and test
# ---------------------------------------------------------------------------
def _reference(x, p, ksize, stride, padding, eps=1e-5):
    def conv(inp, wgt, b):
        y = jax.lax.conv_general_dilated(
            inp, wgt, window_strides=(stride, stride),
            padding=((padding, padding), (padding, padding)),
            dimension_numbers=("NCHW", "OIHW", "NCHW"))
        return y + b[None, :, None, None]

    def bn(y, g, be, m, v):
        return (y - m[None, :, None, None]) * (
            g[None, :, None, None] / jnp.sqrt(v[None, :, None, None] + eps)
        ) + be[None, :, None, None]

    y = bn(conv(x, p["w1"], p["b1"]), p["g1"], p["be1"], p["m1"], p["v1"])
    y = jnp.where(y > 0, y, p["alpha"] * y)            # PReLU (single shared alpha)
    y = bn(conv(y, p["w2"], p["b2"]), p["g2"], p["be2"], p["m2"], p["v2"])
    return y + x


if __name__ == "__main__":
    key = jax.random.PRNGKey(0)
    ks = jax.random.split(key, 13)

    N, C, H, W = 2, 4, 16, 16
    K, S, P = 3, 1, 1

    x = jax.random.normal(ks[0], (N, C, H, W), jnp.float32)

    fan_in = C * K * K
    bound = 1.0 / (fan_in ** 0.5)
    params = dict(
        w1=jax.random.uniform(ks[1], (C, C, K, K), jnp.float32, -bound, bound),
        b1=jax.random.uniform(ks[2], (C,), jnp.float32, -bound, bound),
        g1=1.0 + 0.1 * jax.random.normal(ks[3], (C,), jnp.float32),
        be1=0.1 * jax.random.normal(ks[4], (C,), jnp.float32),
        m1=0.1 * jax.random.normal(ks[5], (C,), jnp.float32),
        v1=1.0 + 0.5 * jax.random.uniform(ks[6], (C,), jnp.float32),
        w2=jax.random.uniform(ks[7], (C, C, K, K), jnp.float32, -bound, bound),
        b2=jax.random.uniform(ks[8], (C,), jnp.float32, -bound, bound),
        g2=1.0 + 0.1 * jax.random.normal(ks[9], (C,), jnp.float32),
        be2=0.1 * jax.random.normal(ks[10], (C,), jnp.float32),
        m2=0.1 * jax.random.normal(ks[11], (C,), jnp.float32),
        v2=1.0 + 0.5 * jax.random.uniform(ks[12], (C,), jnp.float32),
        alpha=jnp.array(0.25, dtype=jnp.float32),      # nn.PReLU() default init
    )

    y = residual_block(x, params, kernel_size=K, stride=S, padding=P)
    jax.block_until_ready(y)

    ref = _reference(x, params, K, S, P)
    assert y.shape == (N, C, H, W)
    max_err = float(jnp.max(jnp.abs(y - ref)))
    assert jnp.allclose(y, ref, atol=5e-2, rtol=5e-2), f"max_err={max_err}"
    print("KERNEL_OK")
</pallas_src>

<mosaic_0001>
module attributes {stable_mosaic.version = 11 : i64} {
  func.func @_conv_bn_prelu_kernel(%arg0: i32, %arg1: memref<36x256xbf16, #tpu.memory_space<vmem>>, %arg2: memref<4x36xbf16, #tpu.memory_space<vmem>>, %arg3: memref<4x1xf32, #tpu.memory_space<vmem>>, %arg4: memref<1x1xf32, #tpu.memory_space<vmem>>, %arg5: memref<4x256xf32, #tpu.memory_space<vmem>>) attributes {dimension_semantics = [#tpu.dimension_semantics<parallel>], iteration_bounds = array<i64: 2>, scalar_prefetch = 0 : i64, scratch_operands = 0 : i64, tpu.core_type = #tpu.core_type<tc>, window_params = [{transform_indices = @transform_0, window_bounds = array<i64: 36, 256>}, {pipeline_mode = #tpu.pipeline_mode<synchronous>, transform_indices = @transform_1, window_bounds = array<i64: 4, 36>}, {pipeline_mode = #tpu.pipeline_mode<synchronous>, transform_indices = @transform_2, window_bounds = array<i64: 4, 1>}, {pipeline_mode = #tpu.pipeline_mode<synchronous>, transform_indices = @transform_3, window_bounds = array<i64: 1, 1>}, {transform_indices = @transform_4, window_bounds = array<i64: 4, 256>}]} {
    %c0 = arith.constant 0 : index
    %c0_0 = arith.constant 0 : index
    %0 = vector.load %arg2[%c0, %c0_0] : memref<4x36xbf16, #tpu.memory_space<vmem>>, vector<4x36xbf16>
    %c0_1 = arith.constant 0 : index
    %c0_2 = arith.constant 0 : index
    %1 = vector.load %arg1[%c0_1, %c0_2] : memref<36x256xbf16, #tpu.memory_space<vmem>>, vector<36x256xbf16>
    %cst = arith.constant dense<0.000000e+00> : vector<4x256xf32>
    %2 = tpu.matmul %0, %1, %cst {dimension_numbers = #tpu.dot_dimension_numbers<[1], [0], [0], [1], [0, 0, 1, 1], [], []>} : vector<4x36xbf16>, vector<36x256xbf16>, vector<4x256xf32> -> vector<4x256xf32>
    %c0_3 = arith.constant 0 : index
    %c0_4 = arith.constant 0 : index
    %3 = vector.load %arg3[%c0_3, %c0_4] : memref<4x1xf32, #tpu.memory_space<vmem>>, vector<4x1xf32>
    %4 = vector.broadcast %3 : vector<4x1xf32> to vector<4x256xf32>
    %5 = arith.addf %2, %4 : vector<4x256xf32>
    %cst_5 = arith.constant 0.000000e+00 : f32
    %6 = vector.broadcast %cst_5 : f32 to vector<4x256xf32>
    %7 = arith.cmpf ogt, %5, %6 : vector<4x256xf32>
    %c0_6 = arith.constant 0 : index
    %c0_7 = arith.constant 0 : index
    %8 = vector.load %arg4[%c0_6, %c0_7] : memref<1x1xf32, #tpu.memory_space<vmem>>, vector<1x1xf32>
    %9 = vector.broadcast %8 : vector<1x1xf32> to vector<4x256xf32>
    %10 = arith.mulf %9, %5 : vector<4x256xf32>
    %11 = arith.select %7, %5, %10 : vector<4x256xi1>, vector<4x256xf32>
    %c0_8 = arith.constant 0 : index
    %c0_9 = arith.constant 0 : index
    %12 = vector.load %arg5[%c0_8, %c0_9] : memref<4x256xf32, #tpu.memory_space<vmem>>, vector<4x256xf32>
    tpu.vector_store %arg5[%c0_8, %c0_9], %11 {strides = array<i32>} : memref<4x256xf32, #tpu.memory_space<vmem>>, vector<4x256xf32>,
    return
  }
  func.func @transform_0(%arg0: i32) -> (i32, i32) {
    %c0_i32 = arith.constant 0 : i32
    %c0_i32_0 = arith.constant 0 : i32
    return %c0_i32, %arg0 : i32, i32
  }
  func.func @transform_1(%arg0: i32) -> (i32, i32) {
    %c0_i32 = arith.constant 0 : i32
    %c0_i32_0 = arith.constant 0 : i32
    %c0_i32_1 = arith.constant 0 : i32
    return %c0_i32, %c0_i32_0 : i32, i32
  }
  func.func @transform_2(%arg0: i32) -> (i32, i32) {
    %c0_i32 = arith.constant 0 : i32
    %c0_i32_0 = arith.constant 0 : i32
    %c0_i32_1 = arith.constant 0 : i32
    return %c0_i32, %c0_i32_0 : i32, i32
  }
  func.func @transform_3(%arg0: i32) -> (i32, i32) {
    %c0_i32 = arith.constant 0 : i32
    %c0_i32_0 = arith.constant 0 : i32
    %c0_i32_1 = arith.constant 0 : i32
    return %c0_i32, %c0_i32_0 : i32, i32
  }
  func.func @transform_4(%arg0: i32) -> (i32, i32) {
    %c0_i32 = arith.constant 0 : i32
    %c0_i32_0 = arith.constant 0 : i32
    return %c0_i32, %arg0 : i32, i32
  }
}

module attributes {stable_mosaic.version = 11 : i64} {
  func.func @_conv_bn_add_kernel(%arg0: i32, %arg1: memref<36x256xbf16, #tpu.memory_space<vmem>>, %arg2: memref<4x36xbf16, #tpu.memory_space<vmem>>, %arg3: memref<4x1xf32, #tpu.memory_space<vmem>>, %arg4: memref<4x256xf32, #tpu.memory_space<vmem>>, %arg5: memref<4x256xf32, #tpu.memory_space<vmem>>) attributes {dimension_semantics = [#tpu.dimension_semantics<parallel>], iteration_bounds = array<i64: 2>, scalar_prefetch = 0 : i64, scratch_operands = 0 : i64, tpu.core_type = #tpu.core_type<tc>, window_params = [{transform_indices = @transform_0, window_bounds = array<i64: 36, 256>}, {pipeline_mode = #tpu.pipeline_mode<synchronous>, transform_indices = @transform_1, window_bounds = array<i64: 4, 36>}, {pipeline_mode = #tpu.pipeline_mode<synchronous>, transform_indices = @transform_2, window_bounds = array<i64: 4, 1>}, {transform_indices = @transform_3, window_bounds = array<i64: 4, 256>}, {transform_indices = @transform_4, window_bounds = array<i64: 4, 256>}]} {
    %c0 = arith.constant 0 : index
    %c0_0 = arith.constant 0 : index
    %0 = vector.load %arg2[%c0, %c0_0] : memref<4x36xbf16, #tpu.memory_space<vmem>>, vector<4x36xbf16>
    %c0_1 = arith.constant 0 : index
    %c0_2 = arith.constant 0 : index
    %1 = vector.load %arg1[%c0_1, %c0_2] : memref<36x256xbf16, #tpu.memory_space<vmem>>, vector<36x256xbf16>
    %cst = arith.constant dense<0.000000e+00> : vector<4x256xf32>
    %2 = tpu.matmul %0, %1, %cst {dimension_numbers = #tpu.dot_dimension_numbers<[1], [0], [0], [1], [0, 0, 1, 1], [], []>} : vector<4x36xbf16>, vector<36x256xbf16>, vector<4x256xf32> -> vector<4x256xf32>
    %c0_3 = arith.constant 0 : index
    %c0_4 = arith.constant 0 : index
    %3 = vector.load %arg3[%c0_3, %c0_4] : memref<4x1xf32, #tpu.memory_space<vmem>>, vector<4x1xf32>
    %4 = vector.broadcast %3 : vector<4x1xf32> to vector<4x256xf32>
    %5 = arith.addf %2, %4 : vector<4x256xf32>
    %c0_5 = arith.constant 0 : index
    %c0_6 = arith.constant 0 : index
    %6 = vector.load %arg4[%c0_5, %c0_6] : memref<4x256xf32, #tpu.memory_space<vmem>>, vector<4x256xf32>
    %7 = arith.addf %5, %6 : vector<4x256xf32>
    %c0_7 = arith.constant 0 : index
    %c0_8 = arith.constant 0 : index
    %8 = vector.load %arg5[%c0_7, %c0_8] : memref<4x256xf32, #tpu.memory_space<vmem>>, vector<4x256xf32>
    tpu.vector_store %arg5[%c0_7, %c0_8], %7 {strides = array<i32>} : memref<4x256xf32, #tpu.memory_space<vmem>>, vector<4x256xf32>,
    return
  }
  func.func @transform_0(%arg0: i32) -> (i32, i32) {
    %c0_i32 = arith.constant 0 : i32
    %c0_i32_0 = arith.constant 0 : i32
    return %c0_i32, %arg0 : i32, i32
  }
  func.func @transform_1(%arg0: i32) -> (i32, i32) {
    %c0_i32 = arith.constant 0 : i32
    %c0_i32_0 = arith.constant 0 : i32
    %c0_i32_1 = arith.constant 0 : i32
    return %c0_i32, %c0_i32_0 : i32, i32
  }
  func.func @transform_2(%arg0: i32) -> (i32, i32) {
    %c0_i32 = arith.constant 0 : i32
    %c0_i32_0 = arith.constant 0 : i32
    %c0_i32_1 = arith.constant 0 : i32
    return %c0_i32, %c0_i32_0 : i32, i32
  }
  func.func @transform_3(%arg0: i32) -> (i32, i32) {
    %c0_i32 = arith.constant 0 : i32
    %c0_i32_0 = arith.constant 0 : i32
    return %c0_i32, %arg0 : i32, i32
  }
  func.func @transform_4(%arg0: i32) -> (i32, i32) {
    %c0_i32 = arith.constant 0 : i32
    %c0_i32_0 = arith.constant 0 : i32
    return %c0_i32, %arg0 : i32, i32
  }
}

</mosaic_0001>

<llo_original>
// kernel: residual_block.2
$region0: #{residual_block.2}
  #allocation0 [shape = 'u32[]', space=smem, size = 0x4, offset = 0x4, fixed_abs, tag = 'smem constant byte address 0x4 - core index']
  #allocation1 [shape = 'u32[72,128]{1,0:T(1,128)}', space=vmem, size = 0x9000, scoped, tag = 'internal scratch']
  #allocation2 [shape = 'f32[1,1]{1,0:T(1,128)S(1)}', space=vmem, size = 0x200, scoped, tag = 'scoped memory for residual_block.2']
  %s0 = inlined_call_operand.vmem [shape: bf16[36,512], index: 0, kind: input, shape index: {}]
  %s1 = inlined_call_operand.vmem [shape: bf16[4,36], index: 1, kind: input, shape index: {}]
  %s2 = inlined_call_operand.vmem [shape: f32[4,1], index: 2, kind: input, shape index: {}]
  %s3 = inlined_call_operand.<no memory space> [shape: f32[1,1], index: 3, kind: input, shape index: {}]
  %s4 = inlined_call_operand.vmem [shape: f32[4,512], index: 4, kind: output, shape index: {}]
  %s5 = sld [smem:[#allocation0]]
  $region87: #{residual_block.2} parent=0
    _
  %s7 = ssub.s32 1, %s5
  %s8 = scalar_select 0, %s7, %s5
  %v9 = vstv %s3
  %10 = vst [vmem:[#allocation2] sm:$0x1] %v9
  $region1: #{residual_block.2} parent=0
    #allocation3 [shape = 'u8[40960]{0}', space=vmem, size = 0xa000, scoped, tag = 'input window, operand 0']
    loop: start=0, step=1, limit=4
    $region2: #{residual_block.2} parent=1 // loop_pre_header
      _
    $region3: #{residual_block.2} parent=1 // loop_header
      %s12 = sphi 0, %s16
      %p13 = scmp.ge.s32.totalorder %s12, 4
      %s22 = sphi 0, %s24
      %s25 = sphi 0, %s22
      %s26 = sphi 0, %s25
      %s42 = sphi 0, %s26
      %s46 = sphi 0, %s46
      %s48 = sphi 0, %s46
      %s49 = sphi 0, %s48
      %s63 = sphi 0, %s49
      %s67 = sphi 0, %s67
      %s69 = sphi 0, %s67
      %s70 = sphi 0, %s69
      %s84 = sphi 0, %s70
      %s88 = sphi 0, %s88
      %s90 = sphi 0, %s88
      %s91 = sphi 0, %s90
      %s105 = sphi 0, %s91
      %s111 = sphi 0, %s113
      %s114 = sphi 0, %s111
      %s115 = sphi 0, %s114
      %s131 = sphi 0, %s115
    $region4: #{residual_block.2} parent=1 // loop_header_branch
      %15 = sbr.rel (%p13) target = $region8
    $region5: #{residual_block.2} parent=1 // loop_body
      %s17 = ssub.s32 %s12, 1
      %s18 = ssub.s32 %s12, 2
      %s19 = sadd.s32 %s12, 1
      %s20 = ssub.s32 %s12, %s19
      %p21 = scmp.eq.s32.totalorder %s20, 0
      %s23 = sadd.s32 %s22, 1
      %s24 = scalar_select %p21, %s22, %s23
      %p27 = pneg %p21
      %p28 = scmp.eq.s32.totalorder %s12, 1
      %p29 = por %p27, %p28
      %p30 = scmp.ne.s32.totalorder %s22, %s25
      %p31 = scmp.eq.s32.totalorder %s12, 0
      %p32 = por %p30, %p31
      %p33 = scmp.ne.s32.totalorder %s22, %s25
      %p34 = scmp.eq.s32.totalorder %s17, 1
      %p35 = por %p33, %p34
      %p36 = scmp.ne.s32.totalorder %s25, %s26
      %p37 = scmp.eq.s32.totalorder %s17, 0
      %p38 = por %p36, %p37
      %p39 = scmp.ne.s32.totalorder %s25, %s26
      %p40 = scmp.eq.s32.totalorder %s18, 1
      %p41 = por %p39, %p40
      %p43 = scmp.ne.s32.totalorder %s26, %s42
      %p44 = scmp.eq.s32.totalorder %s18, 0
      %p45 = por %p43, %p44
      %s47 = sadd.s32 %s46, 1
      %p50 = scmp.eq.s32.totalorder %s12, 1
      %p51 = scmp.ne.s32.totalorder %s46, %s48
      %p52 = scmp.eq.s32.totalorder %s12, 0
      %p53 = por %p51, %p52
      %p54 = scmp.ne.s32.totalorder %s46, %s48
      %p55 = scmp.eq.s32.totalorder %s17, 1
      %p56 = por %p54, %p55
      %p57 = scmp.ne.s32.totalorder %s48, %s49
      %p58 = scmp.eq.s32.totalorder %s17, 0
      %p59 = por %p57, %p58
      %p60 = scmp.ne.s32.totalorder %s48, %s49
      %p61 = scmp.eq.s32.totalorder %s18, 1
      %p62 = por %p60, %p61
      %p64 = scmp.ne.s32.totalorder %s49, %s63
      %p65 = scmp.eq.s32.totalorder %s18, 0
      %p66 = por %p64, %p65
      %s68 = sadd.s32 %s67, 1
      %p71 = scmp.eq.s32.totalorder %s12, 1
      %p72 = scmp.ne.s32.totalorder %s67, %s69
      %p73 = scmp.eq.s32.totalorder %s12, 0
      %p74 = por %p72, %p73
      %p75 = scmp.ne.s32.totalorder %s67, %s69
      %p76 = scmp.eq.s32.totalorder %s17, 1
      %p77 = por %p75, %p76
      %p78 = scmp.ne.s32.totalorder %s69, %s70
      %p79 = scmp.eq.s32.totalorder %s17, 0
      %p80 = por %p78, %p79
      %p81 = scmp.ne.s32.totalorder %s69, %s70
      %p82 = scmp.eq.s32.totalorder %s18, 1
      %p83 = por %p81, %p82
      %p85 = scmp.ne.s32.totalorder %s70, %s84
      %p86 = scmp.eq.s32.totalorder %s18, 0
      %p87 = por %p85, %p86
      %s89 = sadd.s32 %s88, 1
      %p92 = scmp.eq.s32.totalorder %s12, 1
      %p93 = scmp.ne.s32.totalorder %s88, %s90
      %p94 = scmp.eq.s32.totalorder %s12, 0
      %p95 = por %p93, %p94
      %p96 = scmp.ne.s32.totalorder %s88, %s90
      %p97 = scmp.eq.s32.totalorder %s17, 1
      %p98 = por %p96, %p97
      %p99 = scmp.ne.s32.totalorder %s90, %s91
      %p100 = scmp.eq.s32.totalorder %s17, 0
      %p101 = por %p99, %p100
      %p102 = scmp.ne.s32.totalorder %s90, %s91
      %p103 = scmp.eq.s32.totalorder %s18, 1
      %p104 = por %p102, %p103
      %p106 = scmp.ne.s32.totalorder %s91, %s105
      %p107 = scmp.eq.s32.totalorder %s18, 0
      %p108 = por %p106, %p107
      %s109 = ssub.s32 %s12, %s19
      %p110 = scmp.eq.s32.totalorder %s109, 0
      %s112 = sadd.s32 %s111, 1
      %s113 = scalar_select %p110, %s111, %s112
      %p116 = pneg %p110
      %p117 = scmp.eq.s32.totalorder %s12, 1
      %p118 = por %p116, %p117
      %p119 = scmp.ne.s32.totalorder %s111, %s114
      %p120 = scmp.eq.s32.totalorder %s12, 0
      %p121 = por %p119, %p120
      %p122 = scmp.ne.s32.totalorder %s111, %s114
      %p123 = scmp.eq.s32.totalorder %s17, 1
      %p124 = por %p122, %p123
      %p125 = scmp.ne.s32.totalorder %s114, %s115
      %p126 = scmp.eq.s32.totalorder %s17, 0
      %p127 = por %p125, %p126
      %p128 = scmp.ne.s32.totalorder %s114, %s115
      %p129 = scmp.eq.s32.totalorder %s18, 1
      %p130 = por %p128, %p129
      %p132 = scmp.ne.s32.totalorder %s115, %s131
      %p133 = scmp.eq.s32.totalorder %s18, 0
      %p134 = por %p132, %p133
      %p135 = scmp.le.s32.totalorder 1, %s12
      %p136 = scmp.lt.s32.totalorder %s12, 3
      %p137 = pnand %p135, %p136
      %p138 = pneg %p137
      // Predicated region
      $region9: #{residual_block.2} parent=5 // pred_check
        _
      $region10: #{residual_block.2} parent=5 // pred_check_branch
        %140 = sbr.rel (%p137) target = $region12
      $region11: #{residual_block.2} parent=5 // pred_region
        %s141 = ssub.s32 %s12, 1
        // Predicated region
        $region13: #{residual_block.2} parent=11 // pred_check
          %p142 = pneg %p59
        $region14: #{residual_block.2} parent=11 // pred_check_branch
          %144 = sbr.rel (%p142) target = $region16
        $region15: #{residual_block.2} parent=11 // pred_region
          _
        $region16: #{residual_block.2} parent=11 // pred_fallthru
          _
        // Predicated region
        $region17: #{residual_block.2} parent=11 // pred_check
          %p145 = pneg %p80
        $region18: #{residual_block.2} parent=11 // pred_check_branch
          %147 = sbr.rel (%p145) target = $region20
        $region19: #{residual_block.2} parent=11 // pred_region
          _
        $region20: #{residual_block.2} parent=11 // pred_fallthru
          _
        // Predicated region
        $region21: #{residual_block.2} parent=11 // pred_check
          %p148 = pneg %p101
        $region22: #{residual_block.2} parent=11 // pred_check_branch
          %150 = sbr.rel (%p148) target = $region24
        $region23: #{residual_block.2} parent=11 // pred_region
          _
        $region24: #{residual_block.2} parent=11 // pred_fallthru
          _
      $region12: #{residual_block.2} parent=5 // pred_fallthru
        _
      %p151 = scmp.lt.s32.totalorder %s12, 2
      // Predicated region
      $region25: #{residual_block.2} parent=5 // pred_check
        %p152 = pneg %p151
      $region26: #{residual_block.2} parent=5 // pred_check_branch
        %154 = sbr.rel (%p152) target = $region28
      $region27: #{residual_block.2} parent=5 // pred_region
        // Predicated region
        $region29: #{residual_block.2} parent=27 // pred_check
          %p155 = pneg %p32
        $region30: #{residual_block.2} parent=27 // pred_check_branch
          %157 = sbr.rel (%p155) target = $region32
        $region31: #{residual_block.2} parent=27 // pred_region
          %s158 = sand.u32 %s22, 1
          %s159 = sand.u32 %s22, 1
          %s160 = smul.addr %s159, 40
          %s161 = scalar_lea.vmem [#allocation3], %s160
          %s162 = smul.u32 2, %s12
          %s163 = smul.addr %s162, 4
          %s164 = scalar_lea.vmem %s0, %s163
          // Predicated region
          $region33: #{residual_block.2} parent=31 // pred_check
            _
          $region34: #{residual_block.2} parent=31 // pred_check_branch
            %166 = sbr.rel (0) target = $region36
          $region35: #{residual_block.2} parent=31 // pred_region
            // Predicated region
            $region37: #{residual_block.2} parent=35 // pred_check
              _
            $region38: #{residual_block.2} parent=35 // pred_check_branch
              %168 = sbr.rel (0) target = $region40
            $region39: #{residual_block.2} parent=35 // pred_region
              // Predicated region
              $region52: #{residual_block.2} parent=39 // pred_check
                _
              $region53: #{residual_block.2} parent=39 // pred_check_branch
                %192 = sbr.rel (0) target = $region55
              $region54: #{residual_block.2} parent=39 // pred_region
                loop: start=0, step=1, limit=1
                $region56: #{residual_block.2} parent=54 // loop_pre_header
                  _
                $region57: #{residual_block.2} parent=54 // loop_header
                  %s194 = sphi 0, %s198
                  %p195 = scmp.ge.s32.totalorder %s194, 1
                  %s199 = sphi %s164, %s164
                  %s200 = sphi %s161, %s161
                $region58: #{residual_block.2} parent=54 // loop_header_branch
                  %197 = sbr.rel (%p195) target = $region62
                $region59: #{residual_block.2} parent=54 // loop_body
                  %v201 = vld [vmem:[%s199] sm:$0xff]
                  %202 = vst [vmem:[%s200] sm:$0xff] %v201
                  %v203 = vld [vmem:[%s199 + $0x10] sm:$0xff]
                  %204 = vst [vmem:[%s200 + $0x8] sm:$0xff] %v203
                  %v205 = vld [vmem:[%s199 + $0x20] sm:$0xff]
                  %206 = vst [vmem:[%s200 + $0x10] sm:$0xff] %v205
                  %v207 = vld [vmem:[%s199 + $0x30] sm:$0xff]
                  %208 = vst [vmem:[%s200 + $0x18] sm:$0xff] %v207
                  %v209 = vld [vmem:[%s199 + $0x40] sm:$0xff]
                  %210 = vst [vmem:[%s200 + $0x20] sm:$0xff] %v209
                $region60: #{residual_block.2} parent=54 // loop_footer
                  %s198 = sadd.s32 1, %s194
                $region61: #{residual_block.2} parent=54 // loop_footer_branch
                  %193 = sbr.rel target = $region57
                $region62: #{residual_block.2} parent=54 // loop_exit
                  _
              $region55: #{residual_block.2} parent=39 // pred_fallthru
                _
              // Predicated region
              $region63: #{residual_block.2} parent=39 // pred_check
                _
              $region64: #{residual_block.2} parent=39 // pred_check_branch
                %212 = sbr.rel target = $region66
              $region65: #{residual_block.2} parent=39 // pred_region
                _
              $region66: #{residual_block.2} parent=39 // pred_fallthru
                _
            $region40: #{residual_block.2} parent=35 // pred_fallthru
              _
            // Predicated region
            $region41: #{residual_block.2} parent=35 // pred_check
              _
            $region42: #{residual_block.2} parent=35 // pred_check_branch
              %170 = sbr.rel target = $region44
            $region43: #{residual_block.2} parent=35 // pred_region
              %s172 = ssub.s32 256, 1
              loop: start=0, step=1, limit=1
              $region45: #{residual_block.2} parent=43 // loop_pre_header
                _
              $region46: #{residual_block.2} parent=43 // loop_header
                %s174 = sphi 0, %s178
                %p175 = scmp.ge.s32.totalorder %s174, 1
                %s179 = sphi %s164, %s164
                %s180 = sphi %s161, %s161
              $region47: #{residual_block.2} parent=43 // loop_header_branch
                %177 = sbr.rel (%p175) target = $region51
              $region48: #{residual_block.2} parent=43 // loop_body
                %v181 = vld [vmem:[%s179] sm:%s172]
                %182 = vst [vmem:[%s180] sm:%s172] %v181
                %v183 = vld [vmem:[%s179 + $0x10] sm:%s172]
                %184 = vst [vmem:[%s180 + $0x8] sm:%s172] %v183
                %v185 = vld [vmem:[%s179 + $0x20] sm:%s172]
                %186 = vst [vmem:[%s180 + $0x10] sm:%s172] %v185
                %v187 = vld [vmem:[%s179 + $0x30] sm:%s172]
                %188 = vst [vmem:[%s180 + $0x18] sm:%s172] %v187
                %v189 = vld [vmem:[%s179 + $0x40] sm:%s172]
                %190 = vst [vmem:[%s180 + $0x20] sm:%s172] %v189
              $region49: #{residual_block.2} parent=43 // loop_footer
                %s178 = sadd.s32 1, %s174
              $region50: #{residual_block.2} parent=43 // loop_footer_branch
                %173 = sbr.rel target = $region46
              $region51: #{residual_block.2} parent=43 // loop_exit
                _
            $region44: #{residual_block.2} parent=35 // pred_fallthru
              _
          $region36: #{residual_block.2} parent=31 // pred_fallthru
            _
          %213 = vnop
        $region32: #{residual_block.2} parent=27 // pred_fallthru
          _
      $region28: #{residual_block.2} parent=5 // pred_fallthru
        _
      %p214 = scmp.le.s32.totalorder 1, %s12
      %p215 = scmp.lt.s32.totalorder %s12, 3
      %p216 = pnand %p214, %p215
      %p217 = pneg %p216
      // Predicated region
      $region67: #{residual_block.2} parent=5 // pred_check
        _
      $region68: #{residual_block.2} parent=5 // pred_check_branch
        %219 = sbr.rel (%p216) target = $region70
      $region69: #{residual_block.2} parent=5 // pred_region
        %s220 = ssub.s32 %s12, 1
        %s221 = sand.u32 %s25, 1
        %s222 = sand.u32 %s25, 1
        %s223 = smul.addr %s222, 40
        %s224 = scalar_lea.vmem [#allocation3], %s223
        // Predicated region
        $region71: #{residual_block.2} parent=69 // pred_check
          %p225 = pneg %p38
        $region72: #{residual_block.2} parent=69 // pred_check_branch
          %227 = sbr.rel (%p225) target = $region74
        $region73: #{residual_block.2} parent=69 // pred_region
          _
        $region74: #{residual_block.2} parent=69 // pred_fallthru
          _
        %s228 = sand.u32 %s25, 1
        %s229 = sand.u32 %s25, 1
        %s230 = smul.addr %s229, 40
        %s231 = scalar_lea.vmem [#allocation3], %s230
        %p232 = pneg %p38
        %p233 = pneg %p35
        %p234 = pneg %p59
        %p235 = pneg %p56
        %p236 = pneg %p80
        %p237 = pneg %p77
        %p238 = pneg %p101
        %p239 = pneg %p98
        %p240 = pneg %p127
        %p241 = pneg %p124
        %s242 = smul.u32 2, %s17
        %p243 = scmp.lt.s32.totalorder %s242, 3
        %s244 = scalar_select %p243, %s242, 3
        %s245 = smul.addr %s244, 4
        %s246 = scalar_lea.vmem %s4, %s245
        %s247 = smul.u32 2, %s17
        %s248 = smul.u32 2, %s17
        %p249 = scmp.lt.s32.totalorder %s248, 3
        %s250 = scalar_select %p249, %s248, 3
        %s251 = smul.addr %s250, 4
        %s252 = scalar_lea.vmem %s4, %s251
        %s253 = smul.u32 2, %s17
        %v255 = vld [vmem:[%s1] sm:$0x3]
        %v256 = vld [vmem:[%s224] sm:$0xff]
        %v257 = vld [vmem:[%s224 + $0x8] sm:$0xff]
        %v258 = vld [vmem:[%s224 + $0x10] sm:$0xff]
        %v259 = vld [vmem:[%s224 + $0x18] sm:$0xff]
        %v260 = vld [vmem:[%s224 + $0x20] sm:$0x33]
        %v261 = vld [vmem:[%s2] sm:$0xf]
        %263 = vset.pattern.permute.xlu0 0
        %264 = vperm.xlu0 %263, %v261
        %v265 = vpop.permute.xlu0 %264
        %v272 = vunpack.c.l.b16 %v256
        %v273 = vunpack.c.h.b16 %v256
        %v274 = vunpack.c.l.b16 %v257
        %v275 = vunpack.c.h.b16 %v257
        %v276 = vunpack.c.l.b16 %v258
        %v277 = vunpack.c.h.b16 %v258
        %v278 = vunpack.c.l.b16 %v259
        %v279 = vunpack.c.h.b16 %v259
        %v280 = vunpack.c.l.b16 %v260
        %v281 = vunpack.c.h.b16 %v260
        %v282 = vpack.c.b16 %v274, %v272
        %v283 = vpack.c.b16 %v275, %v273
        %v284 = vpack.c.b16 %v278, %v276
        %v285 = vpack.c.b16 %v279, %v277
        %v286 = vpack.c.b16 %v280, %v280
        %v287 = vpack.c.b16 %v281, %v281
        %vm292 = vcmask 293888
        %v294 = vsel %vm292, %v255, 0
        %vm296 = vcmask 1041408
        %v298 = vsel %vm296, %v286, 0
        %v301 = vsel %vm296, %v287, 0
        %303 = vmatpush.bf16.msra.mxu0 0
        %304 = vmatpush.bf16.msra.mxu0 0
        %305 = vmatpush.bf16.msra.mxu0 0
        %306 = vmatpush.bf16.msra.mxu0 0
        %307 = vmatpush.bf16.msra.mxu0 0
        %308 = vmatpush.bf16.msra.mxu0 %v298
        %309 = vmatpush.bf16.msra.mxu0 %v284
        %310 = vmatpush.bf16.msra.mxu0 %v282
        %311 = vmatmul.bf16.gmra.mxu0 %v294
        %v312 = vpop.f32.mrf.mxu0
        %v313 = vadd.f32 %v265, %v312
        %v314 = vpop.f32.mrf.mxu0
        %315 = vdwg.mxu0
        %316 = vmatpush.bf16.msra.mxu0 0
        %317 = vmatpush.bf16.msra.mxu0 0
        %318 = vmatpush.bf16.msra.mxu0 0
        %319 = vmatpush.bf16.msra.mxu0 0
        %320 = vmatpush.bf16.msra.mxu0 0
        %321 = vmatpush.bf16.msra.mxu0 %v301
        %322 = vmatpush.bf16.msra.mxu0 %v285
        %323 = vmatpush.bf16.msra.mxu0 %v283
        %324 = vmatmul.bf16.gmra.mxu0 %v294
        %v325 = vpop.f32.mrf.mxu0
        %v326 = vadd.f32 %v265, %v325
        %v327 = vpop.f32.mrf.mxu0
        %328 = vdwg.mxu0
        %vm329 = vcmp.gt.f32.partialorder %v313, 0.0
        %vm330 = vcmp.gt.f32.partialorder %v326, 0.0
        %v331 = vld [vmem:[#allocation2] sm:$0x1]
        %v333 = vperm.slane %v331, 0
        %334 = vset.pattern.permute.xlu0 0
        %335 = vperm.xlu0 %334, %v333
        %v336 = vpop.permute.xlu0 %335
        %v338 = vmul.f32 %v336, %v313
        %v339 = vmul.f32 %v336, %v326
        %v340 = vsel %vm329, %v313, %v338
        %v341 = vsel %vm330, %v326, %v339
        %v344 = vrot.slane %v341, 4
        %vm345 = vcmask 1043456
        %v346 = vsel %vm345, %v340, %v344
        %348 = vst [vmem:[%s252] sm:$0xff] %v346
        %s349 = smul.u32 2, %s17
        %p350 = scmp.lt.s32.totalorder %s349, 3
        %s351 = scalar_select %p350, %s349, 3
        %s352 = smul.addr %s351, 4
        %s353 = scalar_lea.vmem %s4, %s352
        // Predicated region
        $region75: #{residual_block.2} parent=69 // pred_check
          %p354 = pneg %p124
        $region76: #{residual_block.2} parent=69 // pred_check_branch
          %356 = sbr.rel (%p354) target = $region78
        $region77: #{residual_block.2} parent=69 // pred_region
          %s357 = smul.u32 2, %s17
        $region78: #{residual_block.2} parent=69 // pred_fallthru
          _
      $region70: #{residual_block.2} parent=5 // pred_fallthru
        _
      %p358 = scmp.le.s32.totalorder 2, %s12
      // Predicated region
      $region79: #{residual_block.2} parent=5 // pred_check
        %p359 = pneg %p358
      $region80: #{residual_block.2} parent=5 // pred_check_branch
        %361 = sbr.rel (%p359) target = $region82
      $region81: #{residual_block.2} parent=5 // pred_region
        %s362 = ssub.s32 %s12, 2
        // Predicated region
        $region83: #{residual_block.2} parent=81 // pred_check
          %p363 = pneg %p130
        $region84: #{residual_block.2} parent=81 // pred_check_branch
          %365 = sbr.rel (%p363) target = $region86
        $region85: #{residual_block.2} parent=81 // pred_region
          %s366 = smul.u32 2, %s18
          %p367 = scmp.lt.s32.totalorder %s366, 3
          %s368 = scalar_select %p367, %s366, 3
          %s369 = smul.addr %s368, 4
          %s370 = scalar_lea.vmem %s4, %s369
        $region86: #{residual_block.2} parent=81 // pred_fallthru
          _
      $region82: #{residual_block.2} parent=5 // pred_fallthru
        _
    $region6: #{residual_block.2} parent=1 // loop_footer
      %s16 = sadd.s32 1, %s12
    $region7: #{residual_block.2} parent=1 // loop_footer_branch
      %11 = sbr.rel target = $region3
    $region8: #{residual_block.2} parent=1 // loop_exit
      _

// kernel: residual_block.3
$region0: #{residual_block.3}
  #allocation0 [shape = 'u32[]', space=smem, size = 0x4, offset = 0x4, fixed_abs, tag = 'smem constant byte address 0x4 - core index']
  #allocation1 [shape = 'u32[72,128]{1,0:T(1,128)}', space=vmem, size = 0x9000, scoped, tag = 'internal scratch']
  %s0 = inlined_call_operand.vmem [shape: bf16[36,512], index: 0, kind: input, shape index: {}]
  %s1 = inlined_call_operand.vmem [shape: bf16[4,36], index: 1, kind: input, shape index: {}]
  %s2 = inlined_call_operand.vmem [shape: f32[4,1], index: 2, kind: input, shape index: {}]
  %s3 = inlined_call_operand.vmem [shape: f32[4,512], index: 3, kind: input, shape index: {}]
  %s4 = inlined_call_operand.vmem [shape: f32[4,512], index: 4, kind: output, shape index: {}]
  %s5 = sld [smem:[#allocation0]]
  $region87: #{residual_block.3} parent=0
    _
  %s7 = ssub.s32 1, %s5
  %s8 = scalar_select 0, %s7, %s5
  $region1: #{residual_block.3} parent=0
    #allocation2 [shape = 'u8[40960]{0}', space=vmem, size = 0xa000, scoped, tag = 'input window, operand 0']
    loop: start=0, step=1, limit=4
    $region2: #{residual_block.3} parent=1 // loop_pre_header
      _
    $region3: #{residual_block.3} parent=1 // loop_header
      %s10 = sphi 0, %s14
      %p11 = scmp.ge.s32.totalorder %s10, 4
      %s20 = sphi 0, %s22
      %s23 = sphi 0, %s20
      %s24 = sphi 0, %s23
      %s40 = sphi 0, %s24
      %s44 = sphi 0, %s44
      %s46 = sphi 0, %s44
      %s47 = sphi 0, %s46
      %s61 = sphi 0, %s47
      %s65 = sphi 0, %s65
      %s67 = sphi 0, %s65
      %s68 = sphi 0, %s67
      %s82 = sphi 0, %s68
      %s88 = sphi 0, %s90
      %s91 = sphi 0, %s88
      %s92 = sphi 0, %s91
      %s108 = sphi 0, %s92
      %s114 = sphi 0, %s116
      %s117 = sphi 0, %s114
      %s118 = sphi 0, %s117
      %s134 = sphi 0, %s118
    $region4: #{residual_block.3} parent=1 // loop_header_branch
      %13 = sbr.rel (%p11) target = $region8
    $region5: #{residual_block.3} parent=1 // loop_body
      %s15 = ssub.s32 %s10, 1
      %s16 = ssub.s32 %s10, 2
      %s17 = sadd.s32 %s10, 1
      %s18 = ssub.s32 %s10, %s17
      %p19 = scmp.eq.s32.totalorder %s18, 0
      %s21 = sadd.s32 %s20, 1
      %s22 = scalar_select %p19, %s20, %s21
      %p25 = pneg %p19
      %p26 = scmp.eq.s32.totalorder %s10, 1
      %p27 = por %p25, %p26
      %p28 = scmp.ne.s32.totalorder %s20, %s23
      %p29 = scmp.eq.s32.totalorder %s10, 0
      %p30 = por %p28, %p29
      %p31 = scmp.ne.s32.totalorder %s20, %s23
      %p32 = scmp.eq.s32.totalorder %s15, 1
      %p33 = por %p31, %p32
      %p34 = scmp.ne.s32.totalorder %s23, %s24
      %p35 = scmp.eq.s32.totalorder %s15, 0
      %p36 = por %p34, %p35
      %p37 = scmp.ne.s32.totalorder %s23, %s24
      %p38 = scmp.eq.s32.totalorder %s16, 1
      %p39 = por %p37, %p38
      %p41 = scmp.ne.s32.totalorder %s24, %s40
      %p42 = scmp.eq.s32.totalorder %s16, 0
      %p43 = por %p41, %p42
      %s45 = sadd.s32 %s44, 1
      %p48 = scmp.eq.s32.totalorder %s10, 1
      %p49 = scmp.ne.s32.totalorder %s44, %s46
      %p50 = scmp.eq.s32.totalorder %s10, 0
      %p51 = por %p49, %p50
      %p52 = scmp.ne.s32.totalorder %s44, %s46
      %p53 = scmp.eq.s32.totalorder %s15, 1
      %p54 = por %p52, %p53
      %p55 = scmp.ne.s32.totalorder %s46, %s47
      %p56 = scmp.eq.s32.totalorder %s15, 0
      %p57 = por %p55, %p56
      %p58 = scmp.ne.s32.totalorder %s46, %s47
      %p59 = scmp.eq.s32.totalorder %s16, 1
      %p60 = por %p58, %p59
      %p62 = scmp.ne.s32.totalorder %s47, %s61
      %p63 = scmp.eq.s32.totalorder %s16, 0
      %p64 = por %p62, %p63
      %s66 = sadd.s32 %s65, 1
      %p69 = scmp.eq.s32.totalorder %s10, 1
      %p70 = scmp.ne.s32.totalorder %s65, %s67
      %p71 = scmp.eq.s32.totalorder %s10, 0
      %p72 = por %p70, %p71
      %p73 = scmp.ne.s32.totalorder %s65, %s67
      %p74 = scmp.eq.s32.totalorder %s15, 1
      %p75 = por %p73, %p74
      %p76 = scmp.ne.s32.totalorder %s67, %s68
      %p77 = scmp.eq.s32.totalorder %s15, 0
      %p78 = por %p76, %p77
      %p79 = scmp.ne.s32.totalorder %s67, %s68
      %p80 = scmp.eq.s32.totalorder %s16, 1
      %p81 = por %p79, %p80
      %p83 = scmp.ne.s32.totalorder %s68, %s82
      %p84 = scmp.eq.s32.totalorder %s16, 0
      %p85 = por %p83, %p84
      %s86 = ssub.s32 %s10, %s17
      %p87 = scmp.eq.s32.totalorder %s86, 0
      %s89 = sadd.s32 %s88, 1
      %s90 = scalar_select %p87, %s88, %s89
      %p93 = pneg %p87
      %p94 = scmp.eq.s32.totalorder %s10, 1
      %p95 = por %p93, %p94
      %p96 = scmp.ne.s32.totalorder %s88, %s91
      %p97 = scmp.eq.s32.totalorder %s10, 0
      %p98 = por %p96, %p97
      %p99 = scmp.ne.s32.totalorder %s88, %s91
      %p100 = scmp.eq.s32.totalorder %s15, 1
      %p101 = por %p99, %p100
      %p102 = scmp.ne.s32.totalorder %s91, %s92
      %p103 = scmp.eq.s32.totalorder %s15, 0
      %p104 = por %p102, %p103
      %p105 = scmp.ne.s32.totalorder %s91, %s92
      %p106 = scmp.eq.s32.totalorder %s16, 1
      %p107 = por %p105, %p106
      %p109 = scmp.ne.s32.totalorder %s92, %s108
      %p110 = scmp.eq.s32.totalorder %s16, 0
      %p111 = por %p109, %p110
      %s112 = ssub.s32 %s10, %s17
      %p113 = scmp.eq.s32.totalorder %s112, 0
      %s115 = sadd.s32 %s114, 1
      %s116 = scalar_select %p113, %s114, %s115
      %p119 = pneg %p113
      %p120 = scmp.eq.s32.totalorder %s10, 1
      %p121 = por %p119, %p120
      %p122 = scmp.ne.s32.totalorder %s114, %s117
      %p123 = scmp.eq.s32.totalorder %s10, 0
      %p124 = por %p122, %p123
      %p125 = scmp.ne.s32.totalorder %s114, %s117
      %p126 = scmp.eq.s32.totalorder %s15, 1
      %p127 = por %p125, %p126
      %p128 = scmp.ne.s32.totalorder %s117, %s118
      %p129 = scmp.eq.s32.totalorder %s15, 0
      %p130 = por %p128, %p129
      %p131 = scmp.ne.s32.totalorder %s117, %s118
      %p132 = scmp.eq.s32.totalorder %s16, 1
      %p133 = por %p131, %p132
      %p135 = scmp.ne.s32.totalorder %s118, %s134
      %p136 = scmp.eq.s32.totalorder %s16, 0
      %p137 = por %p135, %p136
      %p138 = scmp.le.s32.totalorder 1, %s10
      %p139 = scmp.lt.s32.totalorder %s10, 3
      %p140 = pnand %p138, %p139
      %p141 = pneg %p140
      // Predicated region
      $region9: #{residual_block.3} parent=5 // pred_check
        _
      $region10: #{residual_block.3} parent=5 // pred_check_branch
        %143 = sbr.rel (%p140) target = $region12
      $region11: #{residual_block.3} parent=5 // pred_region
        %s144 = ssub.s32 %s10, 1
        // Predicated region
        $region13: #{residual_block.3} parent=11 // pred_check
          %p145 = pneg %p57
        $region14: #{residual_block.3} parent=11 // pred_check_branch
          %147 = sbr.rel (%p145) target = $region16
        $region15: #{residual_block.3} parent=11 // pred_region
          _
        $region16: #{residual_block.3} parent=11 // pred_fallthru
          _
        // Predicated region
        $region17: #{residual_block.3} parent=11 // pred_check
          %p148 = pneg %p78
        $region18: #{residual_block.3} parent=11 // pred_check_branch
          %150 = sbr.rel (%p148) target = $region20
        $region19: #{residual_block.3} parent=11 // pred_region
          _
        $region20: #{residual_block.3} parent=11 // pred_fallthru
          _
      $region12: #{residual_block.3} parent=5 // pred_fallthru
        _
      %p151 = scmp.lt.s32.totalorder %s10, 2
      // Predicated region
      $region21: #{residual_block.3} parent=5 // pred_check
        %p152 = pneg %p151
      $region22: #{residual_block.3} parent=5 // pred_check_branch
        %154 = sbr.rel (%p152) target = $region24
      $region23: #{residual_block.3} parent=5 // pred_region
        // Predicated region
        $region25: #{residual_block.3} parent=23 // pred_check
          %p155 = pneg %p30
        $region26: #{residual_block.3} parent=23 // pred_check_branch
          %157 = sbr.rel (%p155) target = $region28
        $region27: #{residual_block.3} parent=23 // pred_region
          %s158 = sand.u32 %s20, 1
          %s159 = sand.u32 %s20, 1
          %s160 = smul.addr %s159, 40
          %s161 = scalar_lea.vmem [#allocation2], %s160
          %s162 = smul.u32 2, %s10
          %s163 = smul.addr %s162, 4
          %s164 = scalar_lea.vmem %s0, %s163
          // Predicated region
          $region29: #{residual_block.3} parent=27 // pred_check
            _
          $region30: #{residual_block.3} parent=27 // pred_check_branch
            %166 = sbr.rel (0) target = $region32
          $region31: #{residual_block.3} parent=27 // pred_region
            // Predicated region
            $region33: #{residual_block.3} parent=31 // pred_check
              _
            $region34: #{residual_block.3} parent=31 // pred_check_branch
              %168 = sbr.rel (0) target = $region36
            $region35: #{residual_block.3} parent=31 // pred_region
              // Predicated region
              $region48: #{residual_block.3} parent=35 // pred_check
                _
              $region49: #{residual_block.3} parent=35 // pred_check_branch
                %192 = sbr.rel (0) target = $region51
              $region50: #{residual_block.3} parent=35 // pred_region
                loop: start=0, step=1, limit=1
                $region52: #{residual_block.3} parent=50 // loop_pre_header
                  _
                $region53: #{residual_block.3} parent=50 // loop_header
                  %s194 = sphi 0, %s198
                  %p195 = scmp.ge.s32.totalorder %s194, 1
                  %s199 = sphi %s164, %s164
                  %s200 = sphi %s161, %s161
                $region54: #{residual_block.3} parent=50 // loop_header_branch
                  %197 = sbr.rel (%p195) target = $region58
                $region55: #{residual_block.3} parent=50 // loop_body
                  %v201 = vld [vmem:[%s199] sm:$0xff]
                  %202 = vst [vmem:[%s200] sm:$0xff] %v201
                  %v203 = vld [vmem:[%s199 + $0x10] sm:$0xff]
                  %204 = vst [vmem:[%s200 + $0x8] sm:$0xff] %v203
                  %v205 = vld [vmem:[%s199 + $0x20] sm:$0xff]
                  %206 = vst [vmem:[%s200 + $0x10] sm:$0xff] %v205
                  %v207 = vld [vmem:[%s199 + $0x30] sm:$0xff]
                  %208 = vst [vmem:[%s200 + $0x18] sm:$0xff] %v207
                  %v209 = vld [vmem:[%s199 + $0x40] sm:$0xff]
                  %210 = vst [vmem:[%s200 + $0x20] sm:$0xff] %v209
                $region56: #{residual_block.3} parent=50 // loop_footer
                  %s198 = sadd.s32 1, %s194
                $region57: #{residual_block.3} parent=50 // loop_footer_branch
                  %193 = sbr.rel target = $region53
                $region58: #{residual_block.3} parent=50 // loop_exit
                  _
              $region51: #{residual_block.3} parent=35 // pred_fallthru
                _
              // Predicated region
              $region59: #{residual_block.3} parent=35 // pred_check
                _
              $region60: #{residual_block.3} parent=35 // pred_check_branch
                %212 = sbr.rel target = $region62
              $region61: #{residual_block.3} parent=35 // pred_region
                _
              $region62: #{residual_block.3} parent=35 // pred_fallthru
                _
            $region36: #{residual_block.3} parent=31 // pred_fallthru
              _
            // Predicated region
            $region37: #{residual_block.3} parent=31 // pred_check
              _
            $region38: #{residual_block.3} parent=31 // pred_check_branch
              %170 = sbr.rel target = $region40
            $region39: #{residual_block.3} parent=31 // pred_region
              %s172 = ssub.s32 256, 1
              loop: start=0, step=1, limit=1
              $region41: #{residual_block.3} parent=39 // loop_pre_header
                _
              $region42: #{residual_block.3} parent=39 // loop_header
                %s174 = sphi 0, %s178
                %p175 = scmp.ge.s32.totalorder %s174, 1
                %s179 = sphi %s164, %s164
                %s180 = sphi %s161, %s161
              $region43: #{residual_block.3} parent=39 // loop_header_branch
                %177 = sbr.rel (%p175) target = $region47
              $region44: #{residual_block.3} parent=39 // loop_body
                %v181 = vld [vmem:[%s179] sm:%s172]
                %182 = vst [vmem:[%s180] sm:%s172] %v181
                %v183 = vld [vmem:[%s179 + $0x10] sm:%s172]
                %184 = vst [vmem:[%s180 + $0x8] sm:%s172] %v183
                %v185 = vld [vmem:[%s179 + $0x20] sm:%s172]
                %186 = vst [vmem:[%s180 + $0x10] sm:%s172] %v185
                %v187 = vld [vmem:[%s179 + $0x30] sm:%s172]
                %188 = vst [vmem:[%s180 + $0x18] sm:%s172] %v187
                %v189 = vld [vmem:[%s179 + $0x40] sm:%s172]
                %190 = vst [vmem:[%s180 + $0x20] sm:%s172] %v189
              $region45: #{residual_block.3} parent=39 // loop_footer
                %s178 = sadd.s32 1, %s174
              $region46: #{residual_block.3} parent=39 // loop_footer_branch
                %173 = sbr.rel target = $region42
              $region47: #{residual_block.3} parent=39 // loop_exit
                _
            $region40: #{residual_block.3} parent=31 // pred_fallthru
              _
          $region32: #{residual_block.3} parent=27 // pred_fallthru
            _
          %213 = vnop
        $region28: #{residual_block.3} parent=23 // pred_fallthru
          _
        // Predicated region
        $region63: #{residual_block.3} parent=23 // pred_check
          %p214 = pneg %p98
        $region64: #{residual_block.3} parent=23 // pred_check_branch
          %216 = sbr.rel (%p214) target = $region66
        $region65: #{residual_block.3} parent=23 // pred_region
          %s217 = smul.u32 2, %s10
          %p218 = scmp.lt.s32.totalorder %s217, 3
          %s219 = scalar_select %p218, %s217, 3
          %s220 = smul.addr %s219, 4
          %s221 = scalar_lea.vmem %s3, %s220
          %s222 = smul.u32 2, %s10
        $region66: #{residual_block.3} parent=23 // pred_fallthru
          _
      $region24: #{residual_block.3} parent=5 // pred_fallthru
        _
      %p223 = scmp.le.s32.totalorder 1, %s10
      %p224 = scmp.lt.s32.totalorder %s10, 3
      %p225 = pnand %p223, %p224
      %p226 = pneg %p225
      // Predicated region
      $region67: #{residual_block.3} parent=5 // pred_check
        _
      $region68: #{residual_block.3} parent=5 // pred_check_branch
        %228 = sbr.rel (%p225) target = $region70
      $region69: #{residual_block.3} parent=5 // pred_region
        %s229 = ssub.s32 %s10, 1
        %s230 = sand.u32 %s23, 1
        %s231 = sand.u32 %s23, 1
        %s232 = smul.addr %s231, 40
        %s233 = scalar_lea.vmem [#allocation2], %s232
        // Predicated region
        $region71: #{residual_block.3} parent=69 // pred_check
          %p234 = pneg %p36
        $region72: #{residual_block.3} parent=69 // pred_check_branch
          %236 = sbr.rel (%p234) target = $region74
        $region73: #{residual_block.3} parent=69 // pred_region
          _
        $region74: #{residual_block.3} parent=69 // pred_fallthru
          _
        %s237 = sand.u32 %s23, 1
        %s238 = sand.u32 %s23, 1
        %s239 = smul.addr %s238, 40
        %s240 = scalar_lea.vmem [#allocation2], %s239
        %p241 = pneg %p36
        %p242 = pneg %p33
        %p243 = pneg %p57
        %p244 = pneg %p54
        %p245 = pneg %p78
        %p246 = pneg %p75
        %s247 = smul.u32 2, %s15
        %p248 = scmp.lt.s32.totalorder %s247, 3
        %s249 = scalar_select %p248, %s247, 3
        %s250 = smul.addr %s249, 4
        %s251 = scalar_lea.vmem %s3, %s250
        %p252 = pneg %p104
        %p253 = pneg %p101
        %p254 = pneg %p130
        %p255 = pneg %p127
        %s256 = smul.u32 2, %s15
        %p257 = scmp.lt.s32.totalorder %s256, 3
        %s258 = scalar_select %p257, %s256, 3
        %s259 = smul.addr %s258, 4
        %s260 = scalar_lea.vmem %s4, %s259
        %s261 = smul.u32 2, %s15
        %s262 = smul.u32 2, %s15
        %p263 = scmp.lt.s32.totalorder %s262, 3
        %s264 = scalar_select %p263, %s262, 3
        %s265 = smul.addr %s264, 4
        %s266 = scalar_lea.vmem %s3, %s265
        %s267 = smul.u32 2, %s15
        %s268 = smul.u32 2, %s15
        %p269 = scmp.lt.s32.totalorder %s268, 3
        %s270 = scalar_select %p269, %s268, 3
        %s271 = smul.addr %s270, 4
        %s272 = scalar_lea.vmem %s4, %s271
        %s273 = smul.u32 2, %s15
        %v275 = vld [vmem:[%s1] sm:$0x3]
        %v276 = vld [vmem:[%s233] sm:$0xff]
        %v277 = vld [vmem:[%s233 + $0x8] sm:$0xff]
        %v278 = vld [vmem:[%s233 + $0x10] sm:$0xff]
        %v279 = vld [vmem:[%s233 + $0x18] sm:$0xff]
        %v280 = vld [vmem:[%s233 + $0x20] sm:$0x33]
        %v281 = vld [vmem:[%s2] sm:$0xf]
        %283 = vset.pattern.permute.xlu0 0
        %284 = vperm.xlu0 %283, %v281
        %v285 = vpop.permute.xlu0 %284
        %v292 = vunpack.c.l.b16 %v276
        %v293 = vunpack.c.h.b16 %v276
        %v294 = vunpack.c.l.b16 %v277
        %v295 = vunpack.c.h.b16 %v277
        %v296 = vunpack.c.l.b16 %v278
        %v297 = vunpack.c.h.b16 %v278
        %v298 = vunpack.c.l.b16 %v279
        %v299 = vunpack.c.h.b16 %v279
        %v300 = vunpack.c.l.b16 %v280
        %v301 = vunpack.c.h.b16 %v280
        %v302 = vpack.c.b16 %v294, %v292
        %v303 = vpack.c.b16 %v295, %v293
        %v304 = vpack.c.b16 %v298, %v296
        %v305 = vpack.c.b16 %v299, %v297
        %v306 = vpack.c.b16 %v300, %v300
        %v307 = vpack.c.b16 %v301, %v301
        %vm312 = vcmask 293888
        %v314 = vsel %vm312, %v275, 0
        %vm316 = vcmask 1041408
        %v318 = vsel %vm316, %v306, 0
        %v321 = vsel %vm316, %v307, 0
        %323 = vmatpush.bf16.msra.mxu0 0
        %324 = vmatpush.bf16.msra.mxu0 0
        %325 = vmatpush.bf16.msra.mxu0 0
        %326 = vmatpush.bf16.msra.mxu0 0
        %327 = vmatpush.bf16.msra.mxu0 0
        %328 = vmatpush.bf16.msra.mxu0 %v318
        %329 = vmatpush.bf16.msra.mxu0 %v304
        %330 = vmatpush.bf16.msra.mxu0 %v302
        %331 = vmatmul.bf16.gmra.mxu0 %v314
        %v332 = vpop.f32.mrf.mxu0
        %v333 = vadd.f32 %v285, %v332
        %v334 = vpop.f32.mrf.mxu0
        %335 = vdwg.mxu0
        %336 = vmatpush.bf16.msra.mxu0 0
        %337 = vmatpush.bf16.msra.mxu0 0
        %338 = vmatpush.bf16.msra.mxu0 0
        %339 = vmatpush.bf16.msra.mxu0 0
        %340 = vmatpush.bf16.msra.mxu0 0
        %341 = vmatpush.bf16.msra.mxu0 %v321
        %342 = vmatpush.bf16.msra.mxu0 %v305
        %343 = vmatpush.bf16.msra.mxu0 %v303
        %344 = vmatmul.bf16.gmra.mxu0 %v314
        %v345 = vpop.f32.mrf.mxu0
        %v346 = vadd.f32 %v285, %v345
        %v347 = vpop.f32.mrf.mxu0
        %348 = vdwg.mxu0
        %v349 = vld [vmem:[%s266] sm:$0xff]
        %351 = vst [vmem:[#allocation1] ss:$2 sm:$0xff] %v349
        %v352 = vld.sshfl [vmem:[#allocation1] sm:$0xff pattern:$0x75316420]
        %v353 = vld.sshfl [vmem:[#allocation1 + $0x8] sm:$0xff pattern:$0x75316420]
        %v356 = vadd.f32 %v333, %v352
        %v357 = vadd.f32 %v346, %v353
        %v360 = vrot.slane %v357, 4
        %vm361 = vcmask 1043456
        %v362 = vsel %vm361, %v356, %v360
        %364 = vst [vmem:[%s272] sm:$0xff] %v362
        %s365 = smul.u32 2, %s15
        %p366 = scmp.lt.s32.totalorder %s365, 3
        %s367 = scalar_select %p366, %s365, 3
        %s368 = smul.addr %s367, 4
        %s369 = scalar_lea.vmem %s4, %s368
        // Predicated region
        $region75: #{residual_block.3} parent=69 // pred_check
          %p370 = pneg %p127
        $region76: #{residual_block.3} parent=69 // pred_check_branch
          %372 = sbr.rel (%p370) target = $region78
        $region77: #{residual_block.3} parent=69 // pred_region
          %s373 = smul.u32 2, %s15
        $region78: #{residual_block.3} parent=69 // pred_fallthru
          _
      $region70: #{residual_block.3} parent=5 // pred_fallthru
        _
      %p374 = scmp.le.s32.totalorder 2, %s10
      // Predicated region
      $region79: #{residual_block.3} parent=5 // pred_check
        %p375 = pneg %p374
      $region80: #{residual_block.3} parent=5 // pred_check_branch
        %377 = sbr.rel (%p375) target = $region82
      $region81: #{residual_block.3} parent=5 // pred_region
        %s378 = ssub.s32 %s10, 2
        // Predicated region
        $region83: #{residual_block.3} parent=81 // pred_check
          %p379 = pneg %p133
        $region84: #{residual_block.3} parent=81 // pred_check_branch
          %381 = sbr.rel (%p379) target = $region86
        $region85: #{residual_block.3} parent=81 // pred_region
          %s382 = smul.u32 2, %s16
          %p383 = scmp.lt.s32.totalorder %s382, 3
          %s384 = scalar_select %p383, %s382, 3
          %s385 = smul.addr %s384, 4
          %s386 = scalar_lea.vmem %s4, %s385
        $region86: #{residual_block.3} parent=81 // pred_fallthru
          _
      $region82: #{residual_block.3} parent=5 // pred_fallthru
        _
    $region6: #{residual_block.3} parent=1 // loop_footer
      %s14 = sadd.s32 1, %s10
    $region7: #{residual_block.3} parent=1 // loop_footer_branch
      %9 = sbr.rel target = $region3
    $region8: #{residual_block.3} parent=1 // loop_exit
      _

</llo_original>
